<compile_context>
chip_gen: v5e
topology: v5e:2x2
jax: 0.10.0
libtpu: 0.0.40
codegen_flags: <defaults>
</compile_context>

<pallas_src>
import functools

import jax
import jax.numpy as jnp
from jax.experimental import pallas as pl
from jax.experimental.pallas import tpu as pltpu

ALPHA = 0.05
INV_ALPHA = 1.0 / (ALPHA + 1e-4)
LANES = 128
MAX_BLOCK_ROWS = 1024      # (1024,128) f32 tile = 512 KiB; 2 inputs x 2 bufs ~= 2 MiB VMEM
NUM_SPLITS = 2             # leading 'parallel' axis -> both TensorCores on v7x


def _round_up(x, m):
    return (x + m - 1) // m * m


def _bce_blur_kernel(pred_ref, true_ref, out_ref, *, block_rows, rows,
                     inner_steps, needs_mask):
    c = pl.program_id(0)          # 'parallel' split axis (megacore)
    i = pl.program_id(1)          # 'arbitrary' streaming axis

    @pl.when(i == 0)
    def _():
        out_ref[...] = jnp.zeros_like(out_ref)

    x = pred_ref[...].astype(jnp.float32)
    t = true_ref[...].astype(jnp.float32)

    # Shared intermediates: exactly one exp, one log, one reciprocal per element
    # on the EUP; everything else is VPU.
    e = jnp.exp(-jnp.abs(x))                     # exp(-|x|)
    s = 1.0 + e
    inv_s = 1.0 / s                              # exact: INV_ALPHA (~20x) amplifies approx-recip error
    # Stable BCE-with-logits, reduction='none': max(x,0) - x*t + log(1 + exp(-|x|))
    bce = jnp.maximum(x, 0.0) - x * t + jnp.log(s)
    p = jnp.where(x >= 0.0, inv_s, e * inv_s)    # sigmoid(x) from the same e
    af = 1.0 - jnp.exp((p - t - 1.0) * INV_ALPHA)
    val = bce * af

    if needs_mask:
        # Partial / phantom blocks: zero rows past the logical extent
        # (replaces the old wrapper-side pad + sentinel scheme).
        blk = c * inner_steps + i
        valid = rows - blk * block_rows          # may be <=0 (phantom) or >block_rows
        row_id = jax.lax.broadcasted_iota(jnp.int32, (block_rows, LANES), 0)
        val = jnp.where(row_id < valid, val, 0.0)

    # VPU-only strided partial sum into the small resident (8,128) output block;
    # the cross-lane reduce happens once in the wrapper over (8*num_splits,128).
    out_ref[...] += val.reshape(block_rows // 8, 8, LANES).sum(axis=0)


def _elementwise_loss(pred, true):
    x = pred.astype(jnp.float32)
    t = true.astype(jnp.float32)
    e = jnp.exp(-jnp.abs(x))
    bce = jnp.maximum(x, 0.0) - x * t + jnp.log1p(e)
    p = jax.nn.sigmoid(x)
    af = 1.0 - jnp.exp((p - t - 1.0) * INV_ALPHA)
    return bce * af


def _reference(pred, true):
    return jnp.mean(_elementwise_loss(pred, true))


def bce_blur_with_logits_loss(pred, true):
    """pred, true: same shape (e.g. NCHW logits / soft targets), any float dtype.
    Returns the scalar f32 mean BCEBlur loss."""
    assert pred.shape == true.shape
    n = pred.size
    pred_flat = pred.reshape(-1)     # row-major reshape: free, no data movement
    true_flat = true.reshape(-1)

    rem = n % LANES
    n_main = n - rem

    total = jnp.zeros((), jnp.float32)

    if n_main > 0:
        rows = n_main // LANES
        itemsize = jnp.dtype(pred.dtype).itemsize
        sub = {4: 8, 2: 16, 1: 32}.get(itemsize, 8)       # sublane tile per dtype
        block_rows = min(MAX_BLOCK_ROWS, _round_up(rows, sub))
        num_blocks = pl.cdiv(rows, block_rows)
        num_splits = min(NUM_SPLITS, num_blocks)
        inner_steps = pl.cdiv(num_blocks, num_splits)
        # Mask only if a real partial block or a phantom block exists.
        needs_mask = (num_splits * inner_steps * block_rows) != rows

        if rem == 0:
            pred2 = pred_flat.reshape(rows, LANES)
            true2 = true_flat.reshape(rows, LANES)
        else:
            # TODO(synk): unaligned n still costs one slice copy of the main part.
            pred2 = pred_flat[:n_main].reshape(rows, LANES)
            true2 = true_flat[:n_main].reshape(rows, LANES)

        def in_map(c, i):
            # Clamp: the last split may own one phantom (fully masked) block.
            return (jnp.minimum(c * inner_steps + i, num_blocks - 1), 0)

        tile_spec = pl.BlockSpec((block_rows, LANES), in_map)

        kernel = functools.partial(
            _bce_blur_kernel, block_rows=block_rows, rows=rows,
            inner_steps=inner_steps, needs_mask=needs_mask)

        partials = pl.pallas_call(
            kernel,
            out_shape=jax.ShapeDtypeStruct((num_splits * 8, LANES), jnp.float32),
            grid_spec=pltpu.PrefetchScalarGridSpec(
                num_scalar_prefetch=0,
                grid=(num_splits, inner_steps),
                in_specs=[tile_spec, tile_spec],
                out_specs=pl.BlockSpec((8, LANES), lambda c, i: (c, 0)),
            ),
            compiler_params=pltpu.CompilerParams(
                dimension_semantics=("parallel", "arbitrary")),
            cost_estimate=pl.CostEstimate(
                flops=16 * n_main,
                transcendentals=3 * n_main,
                bytes_accessed=2 * n_main * itemsize + num_splits * 8 * LANES * 4),
        )(pred2, true2)

        total = total + jnp.sum(partials)

    if rem > 0:
        # <128-element tail: plain jnp; avoids padding/copying the big streams.
        total = total + jnp.sum(
            _elementwise_loss(pred_flat[n_main:], true_flat[n_main:]))

    # Mean over the ORIGINAL element count (cheap scalar glue).
    return total / jnp.float32(n)


if __name__ == "__main__":
    key = jax.random.PRNGKey(0)
    k1, k2 = jax.random.split(key)

    # Primary case: NCHW logits / soft targets, 2048 elements (single (16,128) tile).
    pred = jax.random.normal(k1, (2, 4, 16, 16), dtype=jnp.float32)
    true = jax.random.uniform(k2, (2, 4, 16, 16), dtype=jnp.float32)
    out = jax.block_until_ready(bce_blur_with_logits_loss(pred, true))
    ref = _reference(pred, true)
    assert jnp.allclose(out, ref, rtol=1e-5, atol=1e-6), (out, ref)

    # Unaligned element count: exercises in-kernel row masking + jnp remainder tail.
    k3, k4 = jax.random.split(k1)
    pred_u = jax.random.normal(k3, (2, 3, 50, 5), dtype=jnp.float32)
    true_u = jax.random.uniform(k4, (2, 3, 50, 5), dtype=jnp.float32)
    out_u = jax.block_until_ready(bce_blur_with_logits_loss(pred_u, true_u))
    ref_u = _reference(pred_u, true_u)
    assert jnp.allclose(out_u, ref_u, rtol=5e-5, atol=1e-6), (out_u, ref_u)

    # bf16 inputs + two-way 'parallel' split (per-core partials, phantom-block clamp).
    k5, k6 = jax.random.split(k2)
    pred_b = jax.random.normal(k5, (4, 6, 128, 128), dtype=jnp.bfloat16)
    true_b = jax.random.uniform(k6, (4, 6, 128, 128), dtype=jnp.bfloat16)
    out_b = jax.block_until_ready(bce_blur_with_logits_loss(pred_b, true_b))
    ref_b = _reference(pred_b, true_b)
    assert jnp.allclose(out_b, ref_b, rtol=3e-4, atol=1e-6), (out_b, ref_b)

    print("KERNEL_OK")
</pallas_src>

<mosaic_0001>
module attributes {stable_mosaic.version = 11 : i64} {
  func.func @_bce_blur_kernel(%arg0: i32, %arg1: i32, %arg2: memref<16x128xf32, #tpu.memory_space<vmem>>, %arg3: memref<16x128xf32, #tpu.memory_space<vmem>>, %arg4: memref<8x128xf32, #tpu.memory_space<vmem>>) attributes {dimension_semantics = [#tpu.dimension_semantics<parallel>, #tpu.dimension_semantics<arbitrary>], iteration_bounds = array<i64: 1, 1>, scalar_prefetch = 0 : i64, scratch_operands = 0 : i64, tpu.core_type = #tpu.core_type<tc>, window_params = [{transform_indices = @transform_0, window_bounds = array<i64: 16, 128>}, {transform_indices = @transform_1, window_bounds = array<i64: 16, 128>}, {transform_indices = @transform_2, window_bounds = array<i64: 8, 128>}]} {
    %c0_i32 = arith.constant 0 : i32
    %0 = arith.cmpi eq, %arg1, %c0_i32 : i32
    %1 = arith.extui %0 : i1 to i32
    %c0_i32_0 = arith.constant 0 : i32
    %2 = arith.cmpi ne, %1, %c0_i32_0 : i32
    scf.if %2 {
      %cst_16 = arith.constant 0.000000e+00 : f32
      %37 = vector.broadcast %cst_16 : f32 to vector<8x128xf32>
      %c0_17 = arith.constant 0 : index
      %c0_18 = arith.constant 0 : index
      %38 = vector.load %arg4[%c0_17, %c0_18] : memref<8x128xf32, #tpu.memory_space<vmem>>, vector<8x128xf32>
      tpu.vector_store %arg4[%c0_17, %c0_18], %37 {strides = array<i32>} : memref<8x128xf32, #tpu.memory_space<vmem>>, vector<8x128xf32>,
    } else {
    }
    %c0 = arith.constant 0 : index
    %c0_1 = arith.constant 0 : index
    %3 = vector.load %arg2[%c0, %c0_1] : memref<16x128xf32, #tpu.memory_space<vmem>>, vector<16x128xf32>
    %c0_2 = arith.constant 0 : index
    %c0_3 = arith.constant 0 : index
    %4 = vector.load %arg3[%c0_2, %c0_3] : memref<16x128xf32, #tpu.memory_space<vmem>>, vector<16x128xf32>
    %5 = math.absf %3 : vector<16x128xf32>
    %cst = arith.constant 0.000000e+00 : f32
    %6 = vector.broadcast %cst : f32 to vector<16x128xf32>
    %7 = arith.subf %6, %5 : vector<16x128xf32>
    %8 = math.exp %7 : vector<16x128xf32>
    %cst_4 = arith.constant 1.000000e+00 : f32
    %9 = vector.broadcast %cst_4 : f32 to vector<16x128xf32>
    %10 = arith.addf %9, %8 : vector<16x128xf32>
    %cst_5 = arith.constant 1.000000e+00 : f32
    %11 = vector.broadcast %cst_5 : f32 to vector<16x128xf32>
    %12 = arith.divf %11, %10 : vector<16x128xf32>
    %cst_6 = arith.constant 0.000000e+00 : f32
    %13 = vector.broadcast %cst_6 : f32 to vector<16x128xf32>
    %14 = arith.maximumf %3, %13 : vector<16x128xf32>
    %15 = arith.mulf %3, %4 : vector<16x128xf32>
    %16 = arith.subf %14, %15 : vector<16x128xf32>
    %17 = math.log %10 : vector<16x128xf32>
    %18 = arith.addf %16, %17 : vector<16x128xf32>
    %cst_7 = arith.constant 0.000000e+00 : f32
    %19 = vector.broadcast %cst_7 : f32 to vector<16x128xf32>
    %20 = arith.cmpf oge, %3, %19 : vector<16x128xf32>
    %21 = arith.mulf %8, %12 : vector<16x128xf32>
    %22 = arith.select %20, %12, %21 : vector<16x128xi1>, vector<16x128xf32>
    %23 = arith.subf %22, %4 : vector<16x128xf32>
    %cst_8 = arith.constant 1.000000e+00 : f32
    %24 = vector.broadcast %cst_8 : f32 to vector<16x128xf32>
    %25 = arith.subf %23, %24 : vector<16x128xf32>
    %cst_9 = arith.constant 19.9600792 : f32
    %26 = vector.broadcast %cst_9 : f32 to vector<16x128xf32>
    %27 = arith.mulf %25, %26 : vector<16x128xf32>
    %28 = math.exp %27 : vector<16x128xf32>
    %cst_10 = arith.constant 1.000000e+00 : f32
    %29 = vector.broadcast %cst_10 : f32 to vector<16x128xf32>
    %30 = arith.subf %29, %28 : vector<16x128xf32>
    %31 = arith.mulf %18, %30 : vector<16x128xf32>
    %c0_11 = arith.constant 0 : index
    %c0_12 = arith.constant 0 : index
    %32 = vector.load %arg4[%c0_11, %c0_12] : memref<8x128xf32, #tpu.memory_space<vmem>>, vector<8x128xf32>
    %33 = vector.shape_cast %31 : vector<16x128xf32> to vector<2x8x128xf32>
    %cst_13 = arith.constant dense<0.000000e+00> : vector<8x128xf32>
    %34 = vector.multi_reduction <add>, %33, %cst_13 [0] : vector<2x8x128xf32> to vector<8x128xf32>
    %35 = arith.addf %32, %34 : vector<8x128xf32>
    %c0_14 = arith.constant 0 : index
    %c0_15 = arith.constant 0 : index
    %36 = vector.load %arg4[%c0_14, %c0_15] : memref<8x128xf32, #tpu.memory_space<vmem>>, vector<8x128xf32>
    tpu.vector_store %arg4[%c0_14, %c0_15], %35 {strides = array<i32>} : memref<8x128xf32, #tpu.memory_space<vmem>>, vector<8x128xf32>,
    return
  }
  func.func @transform_0(%arg0: i32, %arg1: i32) -> (i32, i32) {
    %c1_i32 = arith.constant 1 : i32
    %0 = arith.muli %arg0, %c1_i32 : i32
    %1 = arith.addi %0, %arg1 : i32
    %c0_i32 = arith.constant 0 : i32
    %2 = arith.minsi %1, %c0_i32 : i32
    %c0_i32_0 = arith.constant 0 : i32
    %c0_i32_1 = arith.constant 0 : i32
    return %2, %c0_i32_0 : i32, i32
  }
  func.func @transform_1(%arg0: i32, %arg1: i32) -> (i32, i32) {
    %c1_i32 = arith.constant 1 : i32
    %0 = arith.muli %arg0, %c1_i32 : i32
    %1 = arith.addi %0, %arg1 : i32
    %c0_i32 = arith.constant 0 : i32
    %2 = arith.minsi %1, %c0_i32 : i32
    %c0_i32_0 = arith.constant 0 : i32
    %c0_i32_1 = arith.constant 0 : i32
    return %2, %c0_i32_0 : i32, i32
  }
  func.func @transform_2(%arg0: i32, %arg1: i32) -> (i32, i32) {
    %c0_i32 = arith.constant 0 : i32
    %c0_i32_0 = arith.constant 0 : i32
    return %arg0, %c0_i32 : i32, i32
  }
}

</mosaic_0001>

<llo_original>
// kernel: tpu_custom_call.1
$region0: #{tpu_custom_call.1}
  #allocation0 [shape = 'u32[]', space=smem, size = 0x4, offset = 0x4, fixed_abs, tag = 'smem constant byte address 0x4 - core index']
  #allocation1 [shape = 'u32[72,128]{1,0:T(1,128)}', space=vmem, size = 0x9000, scoped, tag = 'internal scratch']
  %s0 = inlined_call_operand.hbm [shape: f32[16,128], index: 0, kind: input, shape index: {}]
  %s1 = inlined_call_operand.hbm [shape: f32[16,128], index: 1, kind: input, shape index: {}]
  %s2 = inlined_call_operand.hbm [shape: f32[8,128], index: 2, kind: output, shape index: {}]
  %s3 = sld [smem:[#allocation0]]
  $region30: #{tpu_custom_call.1} parent=0
    _
  %s5 = ssub.s32 1, %s3
  %s6 = scalar_select 0, %s5, %s3
  $region1: #{tpu_custom_call.1} parent=0
    #allocation2 [shape = 'u8[8192]{0}', space=vmem, size = 0x2000, scoped, tag = 'input window, operand 0, single buffered']
    #allocation3 [shape = 's32[1]{0}', space=sflag, size = 0x4, scoped, tag = 'scoped memory for tpu_custom_call.1']
    #allocation4 [shape = 's32[1]{0}', space=sflag, size = 0x4, scoped, tag = 'scoped memory for tpu_custom_call.1']
    #allocation5 [shape = 'u8[8192]{0}', space=vmem, size = 0x2000, scoped, tag = 'input window, operand 1, single buffered']
    #allocation6 [shape = 's32[1]{0}', space=sflag, size = 0x4, scoped, tag = 'scoped memory for tpu_custom_call.1']
    #allocation7 [shape = 'u8[4096]{0}', space=vmem, size = 0x1000, scoped, tag = 'output window, operand 0, single buffered']
    %7 = vsyncpa [#allocation3], 0
    %8 = vsyncpa [#allocation6], 0
    %9 = vsyncpa [#allocation4], 0
    // Predicated region
    $region2: #{tpu_custom_call.1} parent=1 // pred_check
      _
    $region3: #{tpu_custom_call.1} parent=1 // pred_check_branch
      %11 = sbr.rel (0) target = $region5
    $region4: #{tpu_custom_call.1} parent=1 // pred_region
      %s12 = sadd.s32 0, 0
      %p13 = scmp.lt.s32.totalorder %s12, 0
      %s14 = scalar_select %p13, %s12, 0
      %s15 = smul.u32 2, %s14
      %17 = vsyncadd [#allocation3], 0
      %s18 = smul.addr %s15, 8
      %s19 = scalar_lea.hbm %s0, %s18
      %s20 = sshll.u32 %s19, 4
      %s21 = int_to_ptr.hbm [resolvable:$true] %s20
      %s22 = sshll.u32 [#allocation2], 4
      %s23 = int_to_ptr.vmem [resolvable:$true] %s22
      %28 = dma.hbm_to_vmem [thread:$0]  %s21, 256, %s23, [#allocation3], 128, 128, 8
    $region5: #{tpu_custom_call.1} parent=1 // pred_fallthru
      _
    // Predicated region
    $region6: #{tpu_custom_call.1} parent=1 // pred_check
      _
    $region7: #{tpu_custom_call.1} parent=1 // pred_check_branch
      %30 = sbr.rel (0) target = $region9
    $region8: #{tpu_custom_call.1} parent=1 // pred_region
      %s31 = sadd.s32 0, 0
      %p32 = scmp.lt.s32.totalorder %s31, 0
      %s33 = scalar_select %p32, %s31, 0
      %s34 = smul.u32 2, %s33
      %36 = vsyncadd [#allocation6], 0
      %s37 = smul.addr %s34, 8
      %s38 = scalar_lea.hbm %s1, %s37
      %s39 = sshll.u32 %s38, 4
      %s40 = int_to_ptr.hbm [resolvable:$true] %s39
      %s41 = sshll.u32 [#allocation5], 4
      %s42 = int_to_ptr.vmem [resolvable:$true] %s41
      %47 = dma.hbm_to_vmem [thread:$0]  %s40, 256, %s42, [#allocation6], 128, 128, 8
    $region9: #{tpu_custom_call.1} parent=1 // pred_fallthru
      _
    // Predicated region
    $region10: #{tpu_custom_call.1} parent=1 // pred_check
      _
    $region11: #{tpu_custom_call.1} parent=1 // pred_check_branch
      %49 = sbr.rel (0) target = $region13
    $region12: #{tpu_custom_call.1} parent=1 // pred_region
      %51 = dma.done [#allocation3], 256
    $region13: #{tpu_custom_call.1} parent=1 // pred_fallthru
      _
    // Predicated region
    $region14: #{tpu_custom_call.1} parent=1 // pred_check
      _
    $region15: #{tpu_custom_call.1} parent=1 // pred_check_branch
      %53 = sbr.rel (0) target = $region17
    $region16: #{tpu_custom_call.1} parent=1 // pred_region
      %55 = dma.done [#allocation6], 256
    $region17: #{tpu_custom_call.1} parent=1 // pred_fallthru
      _
    %s56 = sadd.s32 0, 0
    %p57 = scmp.lt.s32.totalorder %s56, 0
    %s58 = scalar_select %p57, %s56, 0
    %s59 = smul.u32 2, %s58
    %s60 = sadd.s32 0, 0
    %p61 = scmp.lt.s32.totalorder %s60, 0
    %s62 = scalar_select %p61, %s60, 0
    %s63 = smul.u32 2, %s62
    %p64 = scmp.eq.s32.totalorder 0, 0
    // Predicated region
    $region18: #{tpu_custom_call.1} parent=1 // pred_check
      %p65 = pneg %p64
    $region19: #{tpu_custom_call.1} parent=1 // pred_check_branch
      %67 = sbr.rel (%p65) target = $region21
    $region20: #{tpu_custom_call.1} parent=1 // pred_region
      %68 = vst [vmem:[#allocation7] sm:$0xff] 0.0
    $region21: #{tpu_custom_call.1} parent=1 // pred_fallthru
      _
    %v69 = vld [vmem:[#allocation2] sm:$0xff]
    %v70 = vld [vmem:[#allocation2 + $0x8] sm:$0xff]
    %v71 = vld [vmem:[#allocation5] sm:$0xff]
    %v72 = vld [vmem:[#allocation5 + $0x8] sm:$0xff]
    %v73 = vand.u32 2147483647, %v69
    %v74 = vand.u32 2147483647, %v70
    %v75 = vsub.f32 0.0, %v73
    %v76 = vsub.f32 0.0, %v74
    %v77 = vmul.f32 %v75, 1.442695
    %v78 = vpow.pop %v77
    %v79 = vmul.f32 %v76, 1.442695
    %v80 = vpow.pop %v79
    %v81 = vadd.f32 %v78, 1.0
    %v82 = vadd.f32 %v80, 1.0
    %v83 = vrcp.pop %v81
    %v84 = vmul.f32 %v81, %v83
    %v85 = vsub.f32 1.0, %v84
    %v86 = vmul.f32 %v83, %v85
    %v87 = vadd.f32 %v83, %v86
    %vm88 = vweird.f32 %v81
    %vm89 = vweird.f32 %v83
    %vm90 = vmor %vm88, %vm89
    %v91 = vsel %vm90, %v83, %v87
    %v92 = vand.u32 2147483647, %v81
    %vm93 = vcmp.eq.f32.partialorder %v92, 8.507059e+37
    %v94 = vand.u32 %v81, 2147483648
    %v95 = vor.u32 1.1754944e-38, %v94
    %v96 = vsel %vm93, %v95, %v91
    %v97 = vmul.f32 1.0, %v96
    %v98 = vrcp.pop %v82
    %v99 = vmul.f32 %v82, %v98
    %v100 = vsub.f32 1.0, %v99
    %v101 = vmul.f32 %v98, %v100
    %v102 = vadd.f32 %v98, %v101
    %vm103 = vweird.f32 %v82
    %vm104 = vweird.f32 %v98
    %vm105 = vmor %vm103, %vm104
    %v106 = vsel %vm105, %v98, %v102
    %v107 = vand.u32 2147483647, %v82
    %vm108 = vcmp.eq.f32.partialorder %v107, 8.507059e+37
    %v109 = vand.u32 %v82, 2147483648
    %v110 = vor.u32 1.1754944e-38, %v109
    %v111 = vsel %vm108, %v110, %v106
    %v112 = vmul.f32 1.0, %v111
    %v113 = vmax.f32 %v69, 0.0
    %v114 = vmax.f32 %v70, 0.0
    %v115 = vmul.f32 %v69, %v71
    %v116 = vmul.f32 %v70, %v72
    %v117 = vsub.f32 %v113, %v115
    %v118 = vsub.f32 %v114, %v116
    %v119 = vlog2.pop %v81
    %v120 = vmul.f32 %v119, 0.6931472
    %v121 = vlog2.pop %v82
    %v122 = vmul.f32 %v121, 0.6931472
    %v123 = vadd.f32 %v117, %v120
    %v124 = vadd.f32 %v118, %v122
    %vm125 = vcmp.ge.f32.partialorder %v69, 0.0
    %vm126 = vcmp.ge.f32.partialorder %v70, 0.0
    %v127 = vmul.f32 %v78, %v97
    %v128 = vmul.f32 %v80, %v112
    %v129 = vsel %vm125, %v97, %v127
    %v130 = vsel %vm126, %v112, %v128
    %v131 = vsub.f32 %v129, %v71
    %v132 = vsub.f32 %v130, %v72
    %v133 = vsub.f32 %v131, 1.0
    %v134 = vsub.f32 %v132, 1.0
    %v135 = vmul.f32 %v133, 19.96008
    %v136 = vmul.f32 %v134, 19.96008
    %v137 = vmul.f32 %v135, 1.442695
    %v138 = vpow.pop %v137
    %v139 = vmul.f32 %v136, 1.442695
    %v140 = vpow.pop %v139
    %v141 = vsub.f32 1.0, %v138
    %v142 = vsub.f32 1.0, %v140
    %v143 = vmul.f32 %v123, %v141
    %v144 = vmul.f32 %v124, %v142
    %v145 = vld [vmem:[#allocation7] sm:$0xff]
    %v146 = vadd.f32 %v143, %v144
    %v147 = vadd.f32 %v145, %v146
    %148 = vst [vmem:[#allocation7] sm:$0xff] %v147
    // Predicated region
    $region22: #{tpu_custom_call.1} parent=1 // pred_check
      _
    $region23: #{tpu_custom_call.1} parent=1 // pred_check_branch
      %150 = sbr.rel (0) target = $region25
    $region24: #{tpu_custom_call.1} parent=1 // pred_region
      %152 = vsyncadd [#allocation4], 0
      %s154 = sshll.u32 [#allocation7], 4
      %s155 = int_to_ptr.vmem [resolvable:$true] %s154
      %s156 = sshll.u32 %s2, 4
      %s157 = int_to_ptr.hbm [resolvable:$true] %s156
      %159 = dma.vmem_to_hbm [thread:$0]  %s155, 128, %s157, [#allocation4]
    $region25: #{tpu_custom_call.1} parent=1 // pred_fallthru
      _
    // Predicated region
    $region26: #{tpu_custom_call.1} parent=1 // pred_check
      _
    $region27: #{tpu_custom_call.1} parent=1 // pred_check_branch
      %161 = sbr.rel (0) target = $region29
    $region28: #{tpu_custom_call.1} parent=1 // pred_region
      %163 = dma.done [#allocation4], 128
    $region29: #{tpu_custom_call.1} parent=1 // pred_fallthru
      _
    %164 = vsyncpa [#allocation3], 1
    %165 = vsyncpa [#allocation6], 1
    %166 = vsyncpa [#allocation4], 1

</llo_original>
